<compile_context>
chip_gen: v6e
topology: v6e:2x2x1
jax: 0.10.0
libtpu: 0.0.40
codegen_flags: <defaults>
</compile_context>

<pallas_src>
import functools
import math

import jax
import jax.numpy as jnp
import numpy as np
from jax.experimental import pallas as pl
from jax.experimental.pallas import tpu as pltpu

LANES = 128
SUBLANES = 8


def _round_up(x, m):
    return ((x + m - 1) // m) * m


def _croco_loss_kernel(pred_ref, gt_ref, conf_ref, out_ref, *, mode, chunk_rows):
    """pred/gt/conf blocks: [TR, 128] (native dtype); out: [8, 128] f32 partial."""
    tr = pred_ref.shape[0]
    n_chunks = tr // chunk_rows

    acc = jnp.zeros((SUBLANES, LANES), jnp.float32)
    # Stream the block through in chunks, folding the (chunk,128) -> (8,128)
    # reduction into the same pass (pure VPU adds, no XLU, no big f32 temps).
    for i in range(n_chunks):
        sl = pl.ds(i * chunk_rows, chunk_rows)       # static slice (Python i)
        p = pred_ref[sl, :].astype(jnp.float32)
        g = gt_ref[sl, :].astype(jnp.float32)
        c = conf_ref[sl, :].astype(jnp.float32)
        d = jnp.abs(g - p)

        if mode == 'vanilla':
            contrib = d * jnp.exp(-c) + c
        elif mode == 'bounded_1':
            a, b = 0.25, 4.0
            cb = (b - a) * jax.nn.sigmoid(c) + a
            # approx reciprocal = single EUP push instead of a VPU Newton divide
            contrib = d * pl.reciprocal(cb, approx=True) + jnp.log(cb)
        elif mode == 'bounded_2':
            a, b = 3.0, 3.0
            # 2a*(sigmoid(c/b) - 0.5) == a*tanh(c/(2b)); one tanh, constant mul
            cb = a * jnp.tanh(c * (0.5 / b))
            contrib = d * jnp.exp(-cb) + cb
        else:
            raise ValueError(f"unknown mode {mode}")

        acc = acc + contrib.reshape(chunk_rows // SUBLANES, SUBLANES, LANES).sum(axis=0)

    out_ref[...] = acc


def croco_loss(pred, gt, mode='vanilla', *, min_pixels_for_pallas=65536):
    """pred: {'pointmaps': [B,H,W,C], 'conf': [B,H,W,1]}; gt: [B,H,W,C]."""
    if mode not in ('vanilla', 'bounded_1', 'bounded_2'):
        raise ValueError(f"unknown mode {mode}")

    pred_pts = pred['pointmaps']
    conf = pred['conf']
    n_ch = pred_pts.shape[-1]
    n_pix = int(np.prod(pred_pts.shape[:-1]))
    n_elems = n_pix * n_ch

    # Small-input fast path: fixed pallas_call + slab-construction overhead
    # dominates below this size; a fused XLA elementwise+reduce wins.
    if n_pix < min_pixels_for_pallas:
        return _reference_loss(pred, gt, mode=mode)

    # --- native interleaved layout: free reshapes + (at most) a tail pad ---
    flat_pred = pred_pts.reshape(-1)                                   # [N*C]
    flat_gt = gt.reshape(-1)                                           # [N*C]
    flat_conf = jnp.broadcast_to(conf, pred_pts.shape).reshape(-1)     # one N->C*N copy

    rows = -(-n_elems // LANES)
    if rows <= 1024:
        # single block; multiple of 16 so bf16 inputs also tile cleanly
        tr = _round_up(rows, 16)
    else:
        # >= ~16 grid steps for v7x's two TCs + pipeline; 512 <= tr <= 1024,
        # tr a multiple of 256 so the in-kernel chunking divides evenly.
        tr = max(512, min(1024, _round_up(rows // 16, 256)))
    num_blocks = -(-rows // tr)
    rows_padded = num_blocks * tr
    n_padded = rows_padded * LANES
    pad = n_padded - n_elems
    chunk_rows = 256 if tr % 256 == 0 else tr

    if pad:
        flat_pred = jnp.pad(flat_pred, (0, pad))
        flat_gt = jnp.pad(flat_gt, (0, pad))
        flat_conf = jnp.pad(flat_conf, (0, pad))

    pred_s = flat_pred.reshape(rows_padded, LANES)
    gt_s = flat_gt.reshape(rows_padded, LANES)
    conf_s = flat_conf.reshape(rows_padded, LANES)

    kernel = functools.partial(_croco_loss_kernel, mode=mode, chunk_rows=chunk_rows)
    partials = pl.pallas_call(
        kernel,
        out_shape=jax.ShapeDtypeStruct((num_blocks * SUBLANES, LANES), jnp.float32),
        grid_spec=pltpu.PrefetchScalarGridSpec(
            num_scalar_prefetch=0,
            grid=(num_blocks,),
            in_specs=[
                pl.BlockSpec((tr, LANES), lambda i: (i, 0)),
                pl.BlockSpec((tr, LANES), lambda i: (i, 0)),
                pl.BlockSpec((tr, LANES), lambda i: (i, 0)),
            ],
            out_specs=pl.BlockSpec((SUBLANES, LANES), lambda i: (i, 0)),
        ),
        compiler_params=pltpu.CompilerParams(
            dimension_semantics=("parallel",)),
    )(pred_s, gt_s, conf_s)

    total = jnp.sum(partials)

    # Zero-padded tail: loss contribution is exactly 0 for 'vanilla' and
    # 'bounded_2' (d=0, conf term=0).  For 'bounded_1' each padded element
    # contributes log((b-a)*sigmoid(0)+a) = log(2.125); subtract it.
    if mode == 'bounded_1' and pad:
        a, b = 0.25, 4.0
        total = total - jnp.float32(pad * math.log((b - a) * 0.5 + a))

    return total / jnp.float32(n_elems)


def _reference_loss(pred, gt, mode='vanilla'):
    pred_pts = pred['pointmaps'].astype(jnp.float32)
    conf = pred['conf'].astype(jnp.float32)
    if mode == 'vanilla':
        loss = jnp.abs(gt - pred_pts) / jnp.exp(conf) + conf
    elif mode == 'bounded_1':
        a, b = 0.25, 4.0
        c = (b - a) * jax.nn.sigmoid(conf) + a
        loss = jnp.abs(gt - pred_pts) / c + jnp.log(c)
    elif mode == 'bounded_2':
        a, b = 3.0, 3.0
        c = 2.0 * a * (jax.nn.sigmoid(conf / b) - 0.5)
        loss = jnp.abs(gt - pred_pts) / jnp.exp(c) + c
    return jnp.mean(loss)


if __name__ == "__main__":
    key = jax.random.PRNGKey(0)
    k1, k2, k3 = jax.random.split(key, 3)

    B, H, W, C = 2, 16, 16, 3
    pointmaps = jax.random.normal(k1, (B, H, W, C), dtype=jnp.float32)
    conf = jax.random.normal(k2, (B, H, W, 1), dtype=jnp.float32)
    gt = jax.random.normal(k3, (B, H, W, C), dtype=jnp.float32)
    pred = {'pointmaps': pointmaps, 'conf': conf}

    ok = True
    # 'bounded_1' uses the approx (EUP) reciprocal -> slightly looser tolerance.
    tols = {'vanilla': 1e-5, 'bounded_1': 1e-3, 'bounded_2': 1e-5}
    for mode in ('vanilla', 'bounded_1', 'bounded_2'):
        out = jax.block_until_ready(
            croco_loss(pred, gt, mode=mode, min_pixels_for_pallas=0))  # force kernel
        ref = jax.block_until_ready(_reference_loss(pred, gt, mode=mode))
        if not np.allclose(np.asarray(out), np.asarray(ref),
                           rtol=tols[mode], atol=tols[mode]):
            ok = False
            print(f"mismatch in mode={mode}: kernel={out} ref={ref}")

    # bf16 passthrough (inputs stay bf16 on the wire, upcast in-kernel).
    pred_bf = {'pointmaps': pointmaps.astype(jnp.bfloat16),
               'conf': conf.astype(jnp.bfloat16)}
    gt_bf = gt.astype(jnp.bfloat16)
    out = jax.block_until_ready(
        croco_loss(pred_bf, gt_bf, mode='vanilla', min_pixels_for_pallas=0))
    ref = jax.block_until_ready(_reference_loss(pred_bf, gt_bf, mode='vanilla'))
    if not np.allclose(np.asarray(out), np.asarray(ref), rtol=1e-4, atol=1e-4):
        ok = False
        print(f"mismatch in bf16 vanilla: kernel={out} ref={ref}")

    # Small-input fast path (default threshold) — plain JAX, trivially exact.
    out = jax.block_until_ready(croco_loss(pred, gt, mode='vanilla'))
    ref = jax.block_until_ready(_reference_loss(pred, gt, mode='vanilla'))
    if not np.allclose(np.asarray(out), np.asarray(ref), rtol=1e-6, atol=1e-6):
        ok = False
        print(f"mismatch in small-input fallback: {out} vs {ref}")

    if ok:
        print("KERNEL_OK")
</pallas_src>

<mosaic_0001>
module attributes {stable_mosaic.version = 11 : i64} {
  func.func @_croco_loss_kernel(%arg0: i32, %arg1: memref<16x128xf32, #tpu.memory_space<vmem>>, %arg2: memref<16x128xf32, #tpu.memory_space<vmem>>, %arg3: memref<16x128xf32, #tpu.memory_space<vmem>>, %arg4: memref<8x128xf32, #tpu.memory_space<vmem>>) attributes {dimension_semantics = [#tpu.dimension_semantics<parallel>], iteration_bounds = array<i64: 1>, scalar_prefetch = 0 : i64, scratch_operands = 0 : i64, tpu.core_type = #tpu.core_type<tc>, window_params = [{transform_indices = @transform_0, window_bounds = array<i64: 16, 128>}, {transform_indices = @transform_1, window_bounds = array<i64: 16, 128>}, {transform_indices = @transform_2, window_bounds = array<i64: 16, 128>}, {transform_indices = @transform_3, window_bounds = array<i64: 8, 128>}]} {
    %cst = arith.constant 0.000000e+00 : f32
    %0 = vector.broadcast %cst : f32 to vector<8x128xf32>
    %c0 = arith.constant 0 : index
    %c0_0 = arith.constant 0 : index
    %1 = vector.load %arg1[%c0, %c0_0] : memref<16x128xf32, #tpu.memory_space<vmem>>, vector<16x128xf32>
    %c0_1 = arith.constant 0 : index
    %c0_2 = arith.constant 0 : index
    %2 = vector.load %arg2[%c0_1, %c0_2] : memref<16x128xf32, #tpu.memory_space<vmem>>, vector<16x128xf32>
    %c0_3 = arith.constant 0 : index
    %c0_4 = arith.constant 0 : index
    %3 = vector.load %arg3[%c0_3, %c0_4] : memref<16x128xf32, #tpu.memory_space<vmem>>, vector<16x128xf32>
    %4 = arith.subf %2, %1 : vector<16x128xf32>
    %5 = math.absf %4 : vector<16x128xf32>
    %cst_5 = arith.constant 0.000000e+00 : f32
    %6 = vector.broadcast %cst_5 : f32 to vector<16x128xf32>
    %7 = arith.subf %6, %3 : vector<16x128xf32>
    %8 = math.exp %7 : vector<16x128xf32>
    %9 = arith.mulf %5, %8 : vector<16x128xf32>
    %10 = arith.addf %9, %3 : vector<16x128xf32>
    %11 = vector.shape_cast %10 : vector<16x128xf32> to vector<2x8x128xf32>
    %cst_6 = arith.constant dense<0.000000e+00> : vector<8x128xf32>
    %12 = vector.multi_reduction <add>, %11, %cst_6 [0] : vector<2x8x128xf32> to vector<8x128xf32>
    %13 = arith.addf %0, %12 : vector<8x128xf32>
    %c0_7 = arith.constant 0 : index
    %c0_8 = arith.constant 0 : index
    %14 = vector.load %arg4[%c0_7, %c0_8] : memref<8x128xf32, #tpu.memory_space<vmem>>, vector<8x128xf32>
    tpu.vector_store %arg4[%c0_7, %c0_8], %13 {strides = array<i32>} : memref<8x128xf32, #tpu.memory_space<vmem>>, vector<8x128xf32>,
    return
  }
  func.func @transform_0(%arg0: i32) -> (i32, i32) {
    %c0_i32 = arith.constant 0 : i32
    %c0_i32_0 = arith.constant 0 : i32
    return %arg0, %c0_i32 : i32, i32
  }
  func.func @transform_1(%arg0: i32) -> (i32, i32) {
    %c0_i32 = arith.constant 0 : i32
    %c0_i32_0 = arith.constant 0 : i32
    return %arg0, %c0_i32 : i32, i32
  }
  func.func @transform_2(%arg0: i32) -> (i32, i32) {
    %c0_i32 = arith.constant 0 : i32
    %c0_i32_0 = arith.constant 0 : i32
    return %arg0, %c0_i32 : i32, i32
  }
  func.func @transform_3(%arg0: i32) -> (i32, i32) {
    %c0_i32 = arith.constant 0 : i32
    %c0_i32_0 = arith.constant 0 : i32
    return %arg0, %c0_i32 : i32, i32
  }
}

</mosaic_0001>

<llo_original>
// kernel: tpu_custom_call.1
$region0: #{tpu_custom_call.1}
  #allocation0 [shape = 'u32[]', space=smem, size = 0x4, offset = 0x4, fixed_abs, tag = 'smem constant byte address 0x4 - core index']
  #allocation1 [shape = 'u32[144,128]{1,0:T(1,128)}', space=vmem, size = 0x12000, scoped, tag = 'internal scratch']
  %s0 = inlined_call_operand.hbm [shape: f32[16,128], index: 0, kind: input, shape index: {}]
  %s1 = inlined_call_operand.hbm [shape: f32[16,128], index: 1, kind: input, shape index: {}]
  %s2 = inlined_call_operand.hbm [shape: f32[16,128], index: 2, kind: input, shape index: {}]
  %s3 = inlined_call_operand.hbm [shape: f32[8,128], index: 3, kind: output, shape index: {}]
  %s4 = sld [smem:[#allocation0]]
  $region34: #{tpu_custom_call.1} parent=0
    _
  %s6 = ssub.s32 1, %s4
  %s7 = scalar_select 0, %s6, %s4
  $region1: #{tpu_custom_call.1} parent=0
    #allocation2 [shape = 'u8[8192]{0}', space=vmem, size = 0x2000, scoped, tag = 'input window, operand 0, single buffered']
    #allocation3 [shape = 's32[1]{0}', space=sflag, size = 0x4, scoped, tag = 'scoped memory for tpu_custom_call.1']
    #allocation4 [shape = 's32[1]{0}', space=sflag, size = 0x4, scoped, tag = 'scoped memory for tpu_custom_call.1']
    #allocation5 [shape = 'u8[8192]{0}', space=vmem, size = 0x2000, scoped, tag = 'input window, operand 1, single buffered']
    #allocation6 [shape = 's32[1]{0}', space=sflag, size = 0x4, scoped, tag = 'scoped memory for tpu_custom_call.1']
    #allocation7 [shape = 'u8[8192]{0}', space=vmem, size = 0x2000, scoped, tag = 'input window, operand 2, single buffered']
    #allocation8 [shape = 'u8[4096]{0}', space=vmem, size = 0x1000, scoped, tag = 'output window, operand 0, single buffered']
    %8 = vsyncpa [#allocation3], 0
    %9 = vsyncpa [#allocation6], 0
    %10 = vsyncpa [#allocation4], 0
    // Predicated region
    $region2: #{tpu_custom_call.1} parent=1 // pred_check
      _
    $region3: #{tpu_custom_call.1} parent=1 // pred_check_branch
      %12 = sbr.rel (0) target = $region5
    $region4: #{tpu_custom_call.1} parent=1 // pred_region
      %s14 = ssub.s32 256, 256
      %15 = vsyncadd [#allocation3], %s14
      %s16 = sshll.u32 [#allocation2], 4
      %s17 = int_to_ptr.vmem [resolvable:$true] %s16
      %22 = dma.hbm_to_vmem [thread:$0]  %s0, 256, %s17, [#allocation3], 128, 128, 8
    $region5: #{tpu_custom_call.1} parent=1 // pred_fallthru
      _
    // Predicated region
    $region6: #{tpu_custom_call.1} parent=1 // pred_check
      _
    $region7: #{tpu_custom_call.1} parent=1 // pred_check_branch
      %24 = sbr.rel (0) target = $region9
    $region8: #{tpu_custom_call.1} parent=1 // pred_region
      %s26 = ssub.s32 256, 256
      %27 = vsyncadd [#allocation6], %s26
      %s28 = sshll.u32 [#allocation5], 4
      %s29 = int_to_ptr.vmem [resolvable:$true] %s28
      %34 = dma.hbm_to_vmem [thread:$0]  %s1, 256, %s29, [#allocation6], 128, 128, 8
    $region9: #{tpu_custom_call.1} parent=1 // pred_fallthru
      _
    // Predicated region
    $region10: #{tpu_custom_call.1} parent=1 // pred_check
      _
    $region11: #{tpu_custom_call.1} parent=1 // pred_check_branch
      %36 = sbr.rel (0) target = $region13
    $region12: #{tpu_custom_call.1} parent=1 // pred_region
      %s38 = ssub.s32 256, 256
      %39 = vsyncadd [#allocation6], %s38
      %s40 = sshll.u32 [#allocation7], 4
      %s41 = int_to_ptr.vmem [resolvable:$true] %s40
      %46 = dma.hbm_to_vmem [thread:$0]  %s2, 256, %s41, [#allocation6], 128, 128, 8
    $region13: #{tpu_custom_call.1} parent=1 // pred_fallthru
      _
    // Predicated region
    $region14: #{tpu_custom_call.1} parent=1 // pred_check
      _
    $region15: #{tpu_custom_call.1} parent=1 // pred_check_branch
      %48 = sbr.rel (0) target = $region17
    $region16: #{tpu_custom_call.1} parent=1 // pred_region
      %49 = dma.done [#allocation3], 256
    $region17: #{tpu_custom_call.1} parent=1 // pred_fallthru
      _
    // Predicated region
    $region18: #{tpu_custom_call.1} parent=1 // pred_check
      _
    $region19: #{tpu_custom_call.1} parent=1 // pred_check_branch
      %51 = sbr.rel (0) target = $region21
    $region20: #{tpu_custom_call.1} parent=1 // pred_region
      %52 = dma.done [#allocation6], 256
    $region21: #{tpu_custom_call.1} parent=1 // pred_fallthru
      _
    // Predicated region
    $region22: #{tpu_custom_call.1} parent=1 // pred_check
      _
    $region23: #{tpu_custom_call.1} parent=1 // pred_check_branch
      %54 = sbr.rel (0) target = $region25
    $region24: #{tpu_custom_call.1} parent=1 // pred_region
      %55 = dma.done [#allocation6], 256
    $region25: #{tpu_custom_call.1} parent=1 // pred_fallthru
      _
    %v56 = vld [vmem:[#allocation2] sm:$0xff]
    %v57 = vld [vmem:[#allocation2 + $0x8] sm:$0xff]
    %v58 = vld [vmem:[#allocation5] sm:$0xff]
    %v59 = vld [vmem:[#allocation5 + $0x8] sm:$0xff]
    %v60 = vld [vmem:[#allocation7] sm:$0xff]
    %v61 = vld [vmem:[#allocation7 + $0x8] sm:$0xff]
    %v62 = vsub.f32 %v58, %v56
    %v63 = vsub.f32 %v59, %v57
    %v64 = vand.u32 2147483647, %v62
    %v65 = vand.u32 2147483647, %v63
    %v66 = vsub.f32 0.0, %v60
    %v67 = vsub.f32 0.0, %v61
    %v68 = vmul.f32 %v66, 1.442695
    %v69 = vpow.pop %v68
    %v70 = vmul.f32 %v67, 1.442695
    %v71 = vpow.pop %v70
    %v72 = vmul.f32 %v64, %v69
    %v73 = vmul.f32 %v65, %v71
    %v74 = vadd.f32 %v72, %v60
    %v75 = vadd.f32 %v73, %v61
    %v76 = vadd.f32 %v74, %v75
    %v77 = vadd.f32 %v76, 0.0
    %78 = vst [vmem:[#allocation8] sm:$0xff] %v77
    // Predicated region
    $region26: #{tpu_custom_call.1} parent=1 // pred_check
      _
    $region27: #{tpu_custom_call.1} parent=1 // pred_check_branch
      %80 = sbr.rel (0) target = $region29
    $region28: #{tpu_custom_call.1} parent=1 // pred_region
      %s82 = ssub.s32 128, 128
      %83 = vsyncadd [#allocation4], %s82
      %s85 = sshll.u32 [#allocation8], 4
      %s86 = int_to_ptr.vmem [resolvable:$true] %s85
      %88 = dma.vmem_to_hbm [thread:$0]  %s86, 128, %s3, [#allocation4]
    $region29: #{tpu_custom_call.1} parent=1 // pred_fallthru
      _
    // Predicated region
    $region30: #{tpu_custom_call.1} parent=1 // pred_check
      _
    $region31: #{tpu_custom_call.1} parent=1 // pred_check_branch
      %90 = sbr.rel (0) target = $region33
    $region32: #{tpu_custom_call.1} parent=1 // pred_region
      %91 = dma.done [#allocation4], 128
    $region33: #{tpu_custom_call.1} parent=1 // pred_fallthru
      _
    %92 = vsyncpa [#allocation3], 1
    %93 = vsyncpa [#allocation6], 1
    %94 = vsyncpa [#allocation4], 1

</llo_original>
